<compile_context>
chip_gen: v7x
topology: tpu7x:2x2x1
jax: 0.10.0
libtpu: 0.0.40
codegen_flags: <defaults>
</compile_context>

<pallas_src>
import functools

import jax
import jax.numpy as jnp
from jax import lax
from jax.experimental import pallas as pl
from jax.experimental.pallas import tpu as pltpu


def _triangle_integral_coeffs(start, size, n_bins, length):
    """W[r, b, k] = integral over [start_r + b*size_r, start_r + (b+1)*size_r]
    of the bilinear triangle kernel max(0, 1 - |t - k|) dt.   start/size: (R,)."""
    b = jnp.arange(n_bins, dtype=jnp.float32)[None, :, None]
    k = jnp.arange(length, dtype=jnp.float32)[None, None, :]
    start = start[:, None, None]
    size = size[:, None, None]
    lo = start + b * size
    hi = lo + size

    def antideriv(t):
        t = jnp.clip(t, -1.0, 1.0)
        return jnp.where(t < 0.0, 0.5 * (t + 1.0) ** 2, 1.0 - 0.5 * (1.0 - t) ** 2)

    return antideriv(hi - k) - antideriv(lo - k)


def _prroi_pool_kernel(fidx_ref, any_ref, k_ref, mask_ref, feat_ref, out_ref, *,
                       n_images):
    """Grid = (roi_chunk, image).  Output block is resident across the image
    axis (accumulator); a single lane-dense MXU matmul pools a whole chunk."""
    del fidx_ref  # only used by the feature index_map
    c = pl.program_id(0)
    n = pl.program_id(1)

    @pl.when(n == 0)
    def _init():
        out_ref[...] = jnp.zeros_like(out_ref)

    # Skip all compute when no RoI of this chunk lives in image n.
    @pl.when(any_ref[c * n_images + n] > 0)
    def _accumulate():
        # (M, H*W) @ (H*W, C) -> (M, C); M = roi_block * PH * PW.
        pooled = jnp.dot(k_ref[0], feat_ref[0],
                         preferred_element_type=jnp.float32)
        # mask rows whose RoI belongs to a different image (disjoint across n).
        out_ref[...] += pooled[None, :, :] * mask_ref[0]


def prroi_pool2d(features, rois, pooled_height, pooled_width, spatial_scale,
                 roi_block=None):
    PH = int(pooled_height)
    PW = int(pooled_width)
    scale = float(spatial_scale)

    features = features.astype(jnp.float32)
    rois = rois.astype(jnp.float32)
    N, C, H, W = features.shape
    R = rois.shape[0]
    HW = H * W

    if R == 0:
        return jnp.zeros((0, C, PH, PW), jnp.float32)

    # Lane-dense feature layout: (N, H*W, C), channels on lanes.
    feat_r = features.transpose(0, 2, 3, 1).reshape(N, HW, C)

    # ---- sort RoIs by image so chunks mostly reuse one feature slab ----------
    batch_idx = jnp.clip(rois[:, 0].astype(jnp.int32), 0, N - 1)
    order = jnp.argsort(batch_idx)
    inv_order = jnp.argsort(order)
    rois_s = rois[order]
    batch_s = batch_idx[order]

    # Pack enough RoIs per grid step that the MXU M dim is ~256 rows.
    if roi_block is None:
        roi_block = max(1, 256 // (PH * PW))
    r_blk = max(1, min(R, int(roi_block)))
    num_chunks = -(-R // r_blk)
    R_pad = num_chunks * r_blk
    pad = R_pad - R
    M = r_blk * PH * PW

    if pad:
        rois_p = jnp.concatenate(
            [rois_s, jnp.zeros((pad, rois.shape[1]), jnp.float32)], axis=0)
        batch_p = jnp.concatenate(
            [batch_s, jnp.full((pad,), N, jnp.int32)], axis=0)  # sentinel: no image
    else:
        rois_p, batch_p = rois_s, batch_s

    # ---- fused PrRoI coefficients, precomputed in the wrapper ----------------
    x1 = rois_p[:, 1] * scale
    y1 = rois_p[:, 2] * scale
    x2 = rois_p[:, 3] * scale
    y2 = rois_p[:, 4] * scale
    roi_w = jnp.maximum(x2 - x1, 0.0)
    roi_h = jnp.maximum(y2 - y1, 0.0)
    bin_w = roi_w / PW
    bin_h = roi_h / PH
    win = jnp.maximum(0.0, bin_w * bin_h)
    # Matches CUDA: output 0 when the bin area is exactly 0, else integral/area.
    inv_area = jnp.where(win == 0.0, 0.0, 1.0 / jnp.maximum(win, 1e-30))

    wh = _triangle_integral_coeffs(y1, bin_h, PH, H)          # (R_pad, PH, H)
    ww = _triangle_integral_coeffs(x1, bin_w, PW, W)          # (R_pad, PW, W)
    k = jnp.einsum('rph,rqw->rpqhw', wh, ww)                  # pure outer product
    k = k * inv_area[:, None, None, None, None]
    k_all = k.reshape(num_chunks, M, HW)                      # matmul LHS per chunk

    # Per-(chunk, image) row mask: 1.0 where the row's RoI lives in image n.
    row_batch = jnp.repeat(batch_p, PH * PW).reshape(num_chunks, M)
    n_ids = jnp.arange(N, dtype=jnp.int32)
    mask = (row_batch[:, None, :] == n_ids[None, :, None]
            ).astype(jnp.float32)[..., None]                  # (NC, N, M, 1)

    # ---- per-(chunk, image) schedule for SMEM prefetch -----------------------
    chunk_batch = batch_p.reshape(num_chunks, r_blk)
    any_match = jnp.any(chunk_batch[:, :, None] == n_ids[None, None, :], axis=1)
    matched = jnp.where(any_match, n_ids[None, :], -1).astype(jnp.int32)
    carried = lax.cummax(matched, axis=1)                     # carry last needed image
    first_b = jnp.min(jnp.where(chunk_batch >= N, N - 1, chunk_batch), axis=1)
    feat_idx = jnp.where(carried >= 0, carried,
                         first_b[:, None]).astype(jnp.int32)  # always in [0, N)

    feat_idx_flat = feat_idx.reshape(-1)                      # (NC*N,) int32, SMEM
    any_flat = any_match.astype(jnp.int32).reshape(-1)        # (NC*N,) int32, SMEM

    kernel = functools.partial(_prroi_pool_kernel, n_images=N)

    grid_spec = pltpu.PrefetchScalarGridSpec(
        num_scalar_prefetch=2,
        grid=(num_chunks, N),
        in_specs=[
            # fused coefficients for this chunk
            pl.BlockSpec((1, M, HW), lambda c, n, fidx, anym: (c, 0, 0)),
            # per-(chunk, image) row mask
            pl.BlockSpec((1, 1, M, 1), lambda c, n, fidx, anym: (c, n, 0, 0)),
            # feature slab: data-dependent image index; repeats on consecutive
            # steps when the needed image does not change -> DMA is skipped.
            pl.BlockSpec((1, HW, C),
                         lambda c, n, fidx, anym: (fidx[c * N + n], 0, 0)),
        ],
        out_specs=pl.BlockSpec((1, M, C), lambda c, n, fidx, anym: (c, 0, 0)),
    )

    out = pl.pallas_call(
        kernel,
        grid_spec=grid_spec,
        out_shape=jax.ShapeDtypeStruct((num_chunks, M, C), jnp.float32),
        compiler_params=pltpu.CompilerParams(
            dimension_semantics=("parallel", "arbitrary")),
    )(feat_idx_flat, any_flat, k_all, mask, feat_r)

    # (NC, M, C) -> (R, C, PH, PW) in the original RoI order.
    out = out.reshape(R_pad, PH, PW, C)[:R]
    out = out[inv_order]
    return out.transpose(0, 3, 1, 2)


class PrRoIPool2D:
    """Pallas-backed equivalent of the PyTorch PrRoIPool2D module (no params)."""

    def __init__(self, pooled_height, pooled_width, spatial_scale):
        self.pooled_height = int(pooled_height)
        self.pooled_width = int(pooled_width)
        self.spatial_scale = float(spatial_scale)

    def __call__(self, features, rois):
        return prroi_pool2d(features, rois, self.pooled_height,
                            self.pooled_width, self.spatial_scale)


def _prroi_pool2d_reference(features, rois, pooled_h, pooled_w, spatial_scale):
    """Pure-JAX f32 reference (same separable-integral math), for validation."""
    features = features.astype(jnp.float32)
    rois = rois.astype(jnp.float32)
    N, _, H, W = features.shape
    b = jnp.clip(rois[:, 0].astype(jnp.int32), 0, N - 1)
    x1 = rois[:, 1] * spatial_scale
    y1 = rois[:, 2] * spatial_scale
    x2 = rois[:, 3] * spatial_scale
    y2 = rois[:, 4] * spatial_scale
    roi_w = jnp.maximum(x2 - x1, 0.0)
    roi_h = jnp.maximum(y2 - y1, 0.0)
    bin_w = roi_w / pooled_w
    bin_h = roi_h / pooled_h
    win = jnp.maximum(0.0, bin_w * bin_h)
    inv = jnp.where(win == 0.0, 0.0, 1.0 / jnp.maximum(win, 1e-30))
    wh = _triangle_integral_coeffs(y1, bin_h, pooled_h, H)    # (R, PH, H)
    ww = _triangle_integral_coeffs(x1, bin_w, pooled_w, W)    # (R, PW, W)
    feat = features[b]                                        # (R, C, H, W)
    pooled = jnp.einsum('rph,rchw,rqw->rcpq', wh, feat, ww,
                        precision=lax.Precision.HIGHEST)
    return pooled * inv[:, None, None, None]


if __name__ == "__main__":
    N, C, H, W = 2, 4, 16, 16
    pooled_h, pooled_w = 7, 7
    spatial_scale = 0.5  # feature map is half the input-image resolution

    key = jax.random.PRNGKey(0)
    k_feat, k_b, k_p, k_s = jax.random.split(key, 4)
    features = jax.random.normal(k_feat, (N, C, H, W), dtype=jnp.float32)

    pool = PrRoIPool2D(pooled_h, pooled_w, spatial_scale)

    # Test 1: small fixed RoI set (single chunk).
    rois = jnp.array(
        [
            [0.0, 1.3, 2.1, 20.0, 25.0],
            [1.0, 0.0, 0.0, 31.0, 31.0],
            [0.0, 5.5, 7.25, 18.75, 14.5],
        ],
        dtype=jnp.float32,
    )
    out = jax.block_until_ready(pool(features, rois))
    ref = jax.block_until_ready(
        _prroi_pool2d_reference(features, rois, pooled_h, pooled_w, spatial_scale))
    assert out.shape == (rois.shape[0], C, pooled_h, pooled_w), out.shape
    assert bool(jnp.all(jnp.isfinite(out)))
    assert bool(jnp.allclose(out, ref, rtol=2e-2, atol=2e-2)), (
        float(jnp.max(jnp.abs(out - ref))))

    # Test 2: larger random RoI set -> multiple chunks, padding, both images.
    R2 = 13
    b2 = jax.random.randint(k_b, (R2,), 0, N).astype(jnp.float32)
    p2 = jax.random.uniform(k_p, (R2, 2), minval=0.0, maxval=28.0)
    s2 = jax.random.uniform(k_s, (R2, 2), minval=1.0, maxval=4.0)
    rois2 = jnp.stack([b2, p2[:, 0], p2[:, 1],
                       p2[:, 0] + s2[:, 0], p2[:, 1] + s2[:, 1]], axis=1)
    out2 = jax.block_until_ready(pool(features, rois2))
    ref2 = jax.block_until_ready(
        _prroi_pool2d_reference(features, rois2, pooled_h, pooled_w, spatial_scale))
    assert out2.shape == (R2, C, pooled_h, pooled_w), out2.shape
    assert bool(jnp.all(jnp.isfinite(out2)))
    assert bool(jnp.allclose(out2, ref2, rtol=2e-2, atol=2e-2)), (
        float(jnp.max(jnp.abs(out2 - ref2))))

    print("KERNEL_OK")
</pallas_src>

<mosaic_0001>
module attributes {stable_mosaic.version = 11 : i64} {
  func.func @_prroi_pool_kernel(%arg0: i32, %arg1: i32, %arg2: memref<2xi32, #tpu.memory_space<smem>>, %arg3: memref<2xi32, #tpu.memory_space<smem>>, %arg4: memref<1x147x256xf32, #tpu.memory_space<vmem>>, %arg5: memref<1x1x147x1xf32, #tpu.memory_space<vmem>>, %arg6: memref<1x256x4xf32, #tpu.memory_space<vmem>>, %arg7: memref<1x147x4xf32, #tpu.memory_space<vmem>>) attributes {dimension_semantics = [#tpu.dimension_semantics<parallel>, #tpu.dimension_semantics<arbitrary>], iteration_bounds = array<i64: 1, 2>, scalar_prefetch = 2 : i64, scratch_operands = 0 : i64, tpu.core_type = #tpu.core_type<tc>, window_params = [{transform_indices = @transform_0, window_bounds = array<i64: 1, 147, 256>}, {transform_indices = @transform_1, window_bounds = array<i64: 1, 1, 147, 1>}, {transform_indices = @transform_2, window_bounds = array<i64: 1, 256, 4>}, {transform_indices = @transform_3, window_bounds = array<i64: 1, 147, 4>}]} {
    %c0_i32 = arith.constant 0 : i32
    %0 = arith.cmpi eq, %arg1, %c0_i32 : i32
    %1 = arith.extui %0 : i1 to i32
    %c0_i32_0 = arith.constant 0 : i32
    %2 = arith.cmpi ne, %1, %c0_i32_0 : i32
    scf.if %2 {
      %cst = arith.constant 0.000000e+00 : f32
      %10 = vector.broadcast %cst : f32 to vector<1x147x4xf32>
      %c0 = arith.constant 0 : index
      %c0_3 = arith.constant 0 : index
      %c0_4 = arith.constant 0 : index
      %11 = vector.load %arg7[%c0, %c0_3, %c0_4] : memref<1x147x4xf32, #tpu.memory_space<vmem>>, vector<1x147x4xf32>
      tpu.vector_store %arg7[%c0, %c0_3, %c0_4], %10 {strides = array<i32>} : memref<1x147x4xf32, #tpu.memory_space<vmem>>, vector<1x147x4xf32>,
    } else {
    }
    %c2_i32 = arith.constant 2 : i32
    %3 = arith.muli %arg0, %c2_i32 : i32
    %4 = arith.addi %3, %arg1 : i32
    %5 = arith.index_cast %4 : i32 to index
    %6 = memref.load %arg3[%5] : memref<2xi32, #tpu.memory_space<smem>>
    %c0_i32_1 = arith.constant 0 : i32
    %7 = arith.cmpi sgt, %6, %c0_i32_1 : i32
    %8 = arith.extui %7 : i1 to i32
    %c0_i32_2 = arith.constant 0 : i32
    %9 = arith.cmpi ne, %8, %c0_i32_2 : i32
    scf.if %9 {
      %c0 = arith.constant 0 : index
      %c0_3 = arith.constant 0 : index
      %c0_4 = arith.constant 0 : index
      %10 = vector.load %arg4[%c0, %c0_3, %c0_4] : memref<1x147x256xf32, #tpu.memory_space<vmem>>, vector<1x147x256xf32>
      %11 = vector.shape_cast %10 : vector<1x147x256xf32> to vector<147x256xf32>
      %c0_5 = arith.constant 0 : index
      %c0_6 = arith.constant 0 : index
      %c0_7 = arith.constant 0 : index
      %12 = vector.load %arg6[%c0_5, %c0_6, %c0_7] : memref<1x256x4xf32, #tpu.memory_space<vmem>>, vector<1x256x4xf32>
      %13 = vector.shape_cast %12 : vector<1x256x4xf32> to vector<256x4xf32>
      %cst = arith.constant dense<0.000000e+00> : vector<147x4xf32>
      %14 = tpu.matmul %11, %13, %cst {dimension_numbers = #tpu.dot_dimension_numbers<[1], [0], [0], [1], [0, 0, 1, 1], [], []>} : vector<147x256xf32>, vector<256x4xf32>, vector<147x4xf32> -> vector<147x4xf32>
      %c0_8 = arith.constant 0 : index
      %c0_9 = arith.constant 0 : index
      %c0_10 = arith.constant 0 : index
      %15 = vector.load %arg7[%c0_8, %c0_9, %c0_10] : memref<1x147x4xf32, #tpu.memory_space<vmem>>, vector<1x147x4xf32>
      %16 = vector.shape_cast %14 : vector<147x4xf32> to vector<1x147x4xf32>
      %c0_11 = arith.constant 0 : index
      %c0_12 = arith.constant 0 : index
      %c0_13 = arith.constant 0 : index
      %c0_14 = arith.constant 0 : index
      %17 = vector.load %arg5[%c0_11, %c0_12, %c0_13, %c0_14] : memref<1x1x147x1xf32, #tpu.memory_space<vmem>>, vector<1x1x147x1xf32>
      %18 = vector.shape_cast %17 : vector<1x1x147x1xf32> to vector<1x147x1xf32>
      %19 = vector.broadcast %18 : vector<1x147x1xf32> to vector<1x147x4xf32>
      %20 = arith.mulf %16, %19 : vector<1x147x4xf32>
      %21 = arith.addf %15, %20 : vector<1x147x4xf32>
      %c0_15 = arith.constant 0 : index
      %c0_16 = arith.constant 0 : index
      %c0_17 = arith.constant 0 : index
      %22 = vector.load %arg7[%c0_15, %c0_16, %c0_17] : memref<1x147x4xf32, #tpu.memory_space<vmem>>, vector<1x147x4xf32>
      tpu.vector_store %arg7[%c0_15, %c0_16, %c0_17], %21 {strides = array<i32>} : memref<1x147x4xf32, #tpu.memory_space<vmem>>, vector<1x147x4xf32>,
    } else {
    }
    return
  }
  func.func @transform_0(%arg0: i32, %arg1: i32, %arg2: memref<2xi32, #tpu.memory_space<smem>>, %arg3: memref<2xi32, #tpu.memory_space<smem>>) -> (i32, i32, i32) {
    %c0_i32 = arith.constant 0 : i32
    %c0_i32_0 = arith.constant 0 : i32
    %c0_i32_1 = arith.constant 0 : i32
    return %arg0, %c0_i32, %c0_i32_0 : i32, i32, i32
  }
  func.func @transform_1(%arg0: i32, %arg1: i32, %arg2: memref<2xi32, #tpu.memory_space<smem>>, %arg3: memref<2xi32, #tpu.memory_space<smem>>) -> (i32, i32, i32, i32) {
    %c0_i32 = arith.constant 0 : i32
    %c0_i32_0 = arith.constant 0 : i32
    %c0_i32_1 = arith.constant 0 : i32
    return %arg0, %arg1, %c0_i32, %c0_i32_0 : i32, i32, i32, i32
  }
  func.func @transform_2(%arg0: i32, %arg1: i32, %arg2: memref<2xi32, #tpu.memory_space<smem>>, %arg3: memref<2xi32, #tpu.memory_space<smem>>) -> (i32, i32, i32) {
    %c2_i32 = arith.constant 2 : i32
    %0 = arith.muli %arg0, %c2_i32 : i32
    %1 = arith.addi %0, %arg1 : i32
    %2 = arith.index_cast %1 : i32 to index
    %3 = memref.load %arg2[%2] : memref<2xi32, #tpu.memory_space<smem>>
    %c0_i32 = arith.constant 0 : i32
    %c0_i32_0 = arith.constant 0 : i32
    %c0_i32_1 = arith.constant 0 : i32
    return %3, %c0_i32, %c0_i32_0 : i32, i32, i32
  }
  func.func @transform_3(%arg0: i32, %arg1: i32, %arg2: memref<2xi32, #tpu.memory_space<smem>>, %arg3: memref<2xi32, #tpu.memory_space<smem>>) -> (i32, i32, i32) {
    %c0_i32 = arith.constant 0 : i32
    %c0_i32_0 = arith.constant 0 : i32
    %c0_i32_1 = arith.constant 0 : i32
    return %arg0, %c0_i32, %c0_i32_0 : i32, i32, i32
  }
}

</mosaic_0001>

<llo_original>
// kernel: tpu_custom_call.1
$region0: #{tpu_custom_call.1}
  #allocation0 [shape = 'u32[]', space=smem, size = 0x4, offset = 0x4, fixed_abs, tag = 'smem constant byte address 0x4 - core index']
  #allocation1 [shape = 'u32[144,128]{1,0:T(1,128)}', space=vmem, size = 0x12000, scoped, tag = 'internal scratch']
  #allocation2 [shape = 's32[1]{0}', space=sflag, size = 0x4, scoped, tag = 'scoped memory for tpu_custom_call.1']
  #allocation3 [shape = 'u8[512]{0}', space=smem, size = 0x200, scoped, tag = 'prefetched SMEM operand 0']
  #allocation4 [shape = 'u8[512]{0}', space=smem, size = 0x200, scoped, tag = 'prefetched SMEM operand 1']
  %s0 = inlined_call_operand.vmem [shape: s32[2], index: 0, kind: input, shape index: {}]
  %s1 = inlined_call_operand.vmem [shape: s32[2], index: 1, kind: input, shape index: {}]
  %s2 = inlined_call_operand.vmem [shape: f32[1,147,256], index: 2, kind: input, shape index: {}]
  %s3 = inlined_call_operand.vmem [shape: f32[1,2,147,1], index: 3, kind: input, shape index: {}]
  %s4 = inlined_call_operand.vmem [shape: f32[2,256,4], index: 4, kind: input, shape index: {}]
  %s5 = inlined_call_operand.vmem [shape: f32[1,147,4], index: 5, kind: output, shape index: {}]
  %s6 = sld [smem:[#allocation0]]
  $region53: #{tpu_custom_call.1} parent=0
    _
  %s8 = ssub.s32 1, %s6
  %s9 = scalar_select 0, %s8, %s6
  %s10 = sshll.u32 %s0, 4
  %s11 = int_to_ptr.vmem [resolvable:$true] %s10
  %13 = dma.vmem_to_smem %s11, 16, [#allocation3], [#allocation2]
  %s14 = sshll.u32 %s1, 4
  %s15 = int_to_ptr.vmem [resolvable:$true] %s14
  %17 = dma.vmem_to_smem %s15, 16, [#allocation4], [#allocation2]
  %18 = dma.done [#allocation2], 32
  %19 = sfence
  loop: start=0, step=1, limit=4
  $region2: #{tpu_custom_call.1} parent=0 // loop_pre_header
    _
  $region3: #{tpu_custom_call.1} parent=0 // loop_header
    %s21 = sphi 0, %s25
    %p22 = scmp.ge.s32.totalorder %s21, 4
    %s28 = sphi 0, %s40
    %s29 = sphi 0, %s36
    %s30 = sphi 0, %s28
    %s31 = sphi 0, %s29
    %s32 = sphi 0, %s30
    %s33 = sphi 0, %s31
    %s43 = sphi 0, %s45
    %s46 = sphi 0, %s43
    %s47 = sphi 0, %s46
    %s63 = sphi 0, %s47
    %s71 = sphi 0, %s73
    %s74 = sphi 0, %s71
    %s75 = sphi 0, %s74
    %s91 = sphi 0, %s75
    %s103 = sphi 0, %s105
    %s106 = sphi 0, %s103
    %s107 = sphi 0, %s106
    %s123 = sphi 0, %s107
    %s129 = sphi 0, %s131
    %s132 = sphi 0, %s129
    %s133 = sphi 0, %s132
    %s149 = sphi 0, %s133
  $region4: #{tpu_custom_call.1} parent=0 // loop_header_branch
    %24 = sbr.rel (%p22) target = $region8
  $region5: #{tpu_custom_call.1} parent=0 // loop_body
    %s26 = ssub.s32 %s21, 1
    %s27 = ssub.s32 %s21, 2
    %s34 = sadd.s32 1, %s29
    %p35 = scmp.ge.s32.totalorder %s34, 2
    %s36 = scalar_select %p35, 0, %s34
    %s37 = sadd.s32 1, %s28
    %s38 = scalar_select %p35, %s37, %s28
    %p39 = scmp.ge.s32.totalorder %s38, 1
    %s40 = scalar_select %p39, 0, %s38
    %s41 = ssub.s32 %s28, %s40
    %p42 = scmp.eq.s32.totalorder %s41, 0
    %s44 = sadd.s32 %s43, 1
    %s45 = scalar_select %p42, %s43, %s44
    %p48 = pneg %p42
    %p49 = scmp.eq.s32.totalorder %s21, 1
    %p50 = por %p48, %p49
    %p51 = scmp.ne.s32.totalorder %s43, %s46
    %p52 = scmp.eq.s32.totalorder %s21, 0
    %p53 = por %p51, %p52
    %p54 = scmp.ne.s32.totalorder %s43, %s46
    %p55 = scmp.eq.s32.totalorder %s26, 1
    %p56 = por %p54, %p55
    %p57 = scmp.ne.s32.totalorder %s46, %s47
    %p58 = scmp.eq.s32.totalorder %s26, 0
    %p59 = por %p57, %p58
    %p60 = scmp.ne.s32.totalorder %s46, %s47
    %p61 = scmp.eq.s32.totalorder %s27, 1
    %p62 = por %p60, %p61
    %p64 = scmp.ne.s32.totalorder %s47, %s63
    %p65 = scmp.eq.s32.totalorder %s27, 0
    %p66 = por %p64, %p65
    %s67 = ssub.s32 %s28, %s40
    %s68 = ssub.s32 %s29, %s36
    %s69 = sor.u32 %s67, %s68
    %p70 = scmp.eq.s32.totalorder %s69, 0
    %s72 = sadd.s32 %s71, 1
    %s73 = scalar_select %p70, %s71, %s72
    %p76 = pneg %p70
    %p77 = scmp.eq.s32.totalorder %s21, 1
    %p78 = por %p76, %p77
    %p79 = scmp.ne.s32.totalorder %s71, %s74
    %p80 = scmp.eq.s32.totalorder %s21, 0
    %p81 = por %p79, %p80
    %p82 = scmp.ne.s32.totalorder %s71, %s74
    %p83 = scmp.eq.s32.totalorder %s26, 1
    %p84 = por %p82, %p83
    %p85 = scmp.ne.s32.totalorder %s74, %s75
    %p86 = scmp.eq.s32.totalorder %s26, 0
    %p87 = por %p85, %p86
    %p88 = scmp.ne.s32.totalorder %s74, %s75
    %p89 = scmp.eq.s32.totalorder %s27, 1
    %p90 = por %p88, %p89
    %p92 = scmp.ne.s32.totalorder %s75, %s91
    %p93 = scmp.eq.s32.totalorder %s27, 0
    %p94 = por %p92, %p93
    %s95 = smul.u32 %s28, 2
    %s96 = sadd.s32 %s95, %s29
    %s97 = sld [smem:[#allocation3 + %s96]]
    %s98 = smul.u32 %s40, 2
    %s99 = sadd.s32 %s98, %s36
    %s100 = sld [smem:[#allocation3 + %s99]]
    %s101 = ssub.s32 %s97, %s100
    %p102 = scmp.eq.s32.totalorder %s101, 0
    %s104 = sadd.s32 %s103, 1
    %s105 = scalar_select %p102, %s103, %s104
    %p108 = pneg %p102
    %p109 = scmp.eq.s32.totalorder %s21, 1
    %p110 = por %p108, %p109
    %p111 = scmp.ne.s32.totalorder %s103, %s106
    %p112 = scmp.eq.s32.totalorder %s21, 0
    %p113 = por %p111, %p112
    %p114 = scmp.ne.s32.totalorder %s103, %s106
    %p115 = scmp.eq.s32.totalorder %s26, 1
    %p116 = por %p114, %p115
    %p117 = scmp.ne.s32.totalorder %s106, %s107
    %p118 = scmp.eq.s32.totalorder %s26, 0
    %p119 = por %p117, %p118
    %p120 = scmp.ne.s32.totalorder %s106, %s107
    %p121 = scmp.eq.s32.totalorder %s27, 1
    %p122 = por %p120, %p121
    %p124 = scmp.ne.s32.totalorder %s107, %s123
    %p125 = scmp.eq.s32.totalorder %s27, 0
    %p126 = por %p124, %p125
    %s127 = ssub.s32 %s28, %s40
    %p128 = scmp.eq.s32.totalorder %s127, 0
    %s130 = sadd.s32 %s129, 1
    %s131 = scalar_select %p128, %s129, %s130
    %p134 = pneg %p128
    %p135 = scmp.eq.s32.totalorder %s21, 1
    %p136 = por %p134, %p135
    %p137 = scmp.ne.s32.totalorder %s129, %s132
    %p138 = scmp.eq.s32.totalorder %s21, 0
    %p139 = por %p137, %p138
    %p140 = scmp.ne.s32.totalorder %s129, %s132
    %p141 = scmp.eq.s32.totalorder %s26, 1
    %p142 = por %p140, %p141
    %p143 = scmp.ne.s32.totalorder %s132, %s133
    %p144 = scmp.eq.s32.totalorder %s26, 0
    %p145 = por %p143, %p144
    %p146 = scmp.ne.s32.totalorder %s132, %s133
    %p147 = scmp.eq.s32.totalorder %s27, 1
    %p148 = por %p146, %p147
    %p150 = scmp.ne.s32.totalorder %s133, %s149
    %p151 = scmp.eq.s32.totalorder %s27, 0
    %p152 = por %p150, %p151
    %p153 = scmp.le.s32.totalorder 1, %s21
    %p154 = scmp.lt.s32.totalorder %s21, 3
    %p155 = pnand %p153, %p154
    %p156 = pneg %p155
    // Predicated region
    $region9: #{tpu_custom_call.1} parent=5 // pred_check
      _
    $region10: #{tpu_custom_call.1} parent=5 // pred_check_branch
      %158 = sbr.rel (%p155) target = $region12
    $region11: #{tpu_custom_call.1} parent=5 // pred_region
      %s159 = ssub.s32 %s21, 1
      // Predicated region
      $region13: #{tpu_custom_call.1} parent=11 // pred_check
        %p160 = pneg %p59
      $region14: #{tpu_custom_call.1} parent=11 // pred_check_branch
        %162 = sbr.rel (%p160) target = $region16
      $region15: #{tpu_custom_call.1} parent=11 // pred_region
        %p163 = scmp.lt.s32.totalorder %s30, 0
        %s164 = scalar_select %p163, %s30, 0
        %s165 = smul.addr %s164, 38
        %s166 = smul.addr %s165, 8
        %s167 = scalar_lea.vmem %s2, %s166
      $region16: #{tpu_custom_call.1} parent=11 // pred_fallthru
        _
    $region12: #{tpu_custom_call.1} parent=5 // pred_fallthru
      _
    %p168 = scmp.lt.s32.totalorder %s21, 2
    // Predicated region
    $region17: #{tpu_custom_call.1} parent=5 // pred_check
      %p169 = pneg %p168
    $region18: #{tpu_custom_call.1} parent=5 // pred_check_branch
      %171 = sbr.rel (%p169) target = $region20
    $region19: #{tpu_custom_call.1} parent=5 // pred_region
      // Predicated region
      $region21: #{tpu_custom_call.1} parent=19 // pred_check
        %p172 = pneg %p81
      $region22: #{tpu_custom_call.1} parent=19 // pred_check_branch
        %174 = sbr.rel (%p172) target = $region24
      $region23: #{tpu_custom_call.1} parent=19 // pred_region
        %p175 = scmp.lt.s32.totalorder %s28, 0
        %s176 = scalar_select %p175, %s28, 0
        %p177 = scmp.lt.s32.totalorder %s29, 1
        %s178 = scalar_select %p177, %s29, 1
        %s179 = smul.addr %s178, 19
        %s180 = smul.addr %s176, 38
        %s181 = sadd.s32 %s179, %s180
        %s182 = smul.addr %s181, 8
        %s183 = scalar_lea.vmem %s3, %s182
      $region24: #{tpu_custom_call.1} parent=19 // pred_fallthru
        _
      // Predicated region
      $region25: #{tpu_custom_call.1} parent=19 // pred_check
        %p184 = pneg %p113
      $region26: #{tpu_custom_call.1} parent=19 // pred_check_branch
        %186 = sbr.rel (%p184) target = $region28
      $region27: #{tpu_custom_call.1} parent=19 // pred_region
        %s187 = smul.u32 %s28, 2
        %s188 = sadd.s32 %s187, %s29
        %s189 = sld [smem:[#allocation3 + %s188]]
        %p190 = scmp.lt.s32.totalorder %s189, 1
        %s191 = scalar_select %p190, %s189, 1
        %s192 = smul.addr %s191, 32
        %s193 = smul.addr %s192, 8
        %s194 = scalar_lea.vmem %s4, %s193
        %s195 = smul.u32 %s28, 2
        %s196 = sadd.s32 %s195, %s29
        %s197 = sld [smem:[#allocation3 + %s196]]
      $region28: #{tpu_custom_call.1} parent=19 // pred_fallthru
        _
    $region20: #{tpu_custom_call.1} parent=5 // pred_fallthru
      _
    %p198 = scmp.le.s32.totalorder 1, %s21
    %p199 = scmp.lt.s32.totalorder %s21, 3
    %p200 = pnand %p198, %p199
    %p201 = pneg %p200
    // Predicated region
    $region29: #{tpu_custom_call.1} parent=5 // pred_check
      _
    $region30: #{tpu_custom_call.1} parent=5 // pred_check_branch
      %203 = sbr.rel (%p200) target = $region32
    $region31: #{tpu_custom_call.1} parent=5 // pred_region
      %s204 = ssub.s32 %s21, 1
      %p205 = scmp.lt.s32.totalorder %s30, 0
      %s206 = scalar_select %p205, %s30, 0
      %s207 = smul.addr %s206, 38
      %s208 = smul.addr %s207, 8
      %s209 = scalar_lea.vmem %s2, %s208
      %p210 = pneg %p59
      %p211 = pneg %p56
      %p212 = scmp.lt.s32.totalorder %s30, 0
      %s213 = scalar_select %p212, %s30, 0
      %p214 = scmp.lt.s32.totalorder %s31, 1
      %s215 = scalar_select %p214, %s31, 1
      %s216 = smul.addr %s215, 19
      %s217 = smul.addr %s213, 38
      %s218 = sadd.s32 %s216, %s217
      %s219 = smul.addr %s218, 8
      %s220 = scalar_lea.vmem %s3, %s219
      %p221 = pneg %p87
      %p222 = pneg %p84
      %s223 = smul.u32 %s30, 2
      %s224 = sadd.s32 %s223, %s31
      %s225 = sld [smem:[#allocation3 + %s224]]
      %p226 = scmp.lt.s32.totalorder %s225, 1
      %s227 = scalar_select %p226, %s225, 1
      %s228 = smul.addr %s227, 32
      %s229 = smul.addr %s228, 8
      %s230 = scalar_lea.vmem %s4, %s229
      %p231 = pneg %p119
      %p232 = pneg %p116
      %p233 = pneg %p145
      %p234 = pneg %p142
      %p235 = scmp.lt.s32.totalorder %s30, 0
      %s236 = scalar_select %p235, %s30, 0
      %s237 = smul.addr %s236, 19
      %s238 = smul.addr %s237, 8
      %s239 = scalar_lea.vmem %s5, %s238
      %p240 = scmp.lt.s32.totalorder %s30, 0
      %s241 = scalar_select %p240, %s30, 0
      %s242 = smul.addr %s241, 38
      %s243 = smul.addr %s242, 8
      %s244 = scalar_lea.vmem %s2, %s243
      %p245 = scmp.lt.s32.totalorder %s30, 0
      %s246 = scalar_select %p245, %s30, 0
      %p247 = scmp.lt.s32.totalorder %s31, 1
      %s248 = scalar_select %p247, %s31, 1
      %s249 = smul.addr %s248, 19
      %s250 = smul.addr %s246, 38
      %s251 = sadd.s32 %s249, %s250
      %s252 = smul.addr %s251, 8
      %s253 = scalar_lea.vmem %s3, %s252
      %s254 = smul.u32 %s30, 2
      %s255 = sadd.s32 %s254, %s31
      %s256 = sld [smem:[#allocation3 + %s255]]
      %p257 = scmp.lt.s32.totalorder %s256, 1
      %s258 = scalar_select %p257, %s256, 1
      %s259 = smul.addr %s258, 32
      %s260 = smul.addr %s259, 8
      %s261 = scalar_lea.vmem %s4, %s260
      %s262 = smul.u32 %s30, 2
      %s263 = sadd.s32 %s262, %s31
      %s264 = sld [smem:[#allocation3 + %s263]]
      %p265 = scmp.lt.s32.totalorder %s30, 0
      %s266 = scalar_select %p265, %s30, 0
      %s267 = smul.addr %s266, 19
      %s268 = smul.addr %s267, 8
      %s269 = scalar_lea.vmem %s5, %s268
      %p270 = scmp.eq.s32.totalorder %s31, 0
      // Predicated region
      $region33: #{tpu_custom_call.1} parent=31 // pred_check
        %p271 = pneg %p270
      $region34: #{tpu_custom_call.1} parent=31 // pred_check_branch
        %273 = sbr.rel (%p271) target = $region36
      $region35: #{tpu_custom_call.1} parent=31 // pred_region
        %vm274 = vcmask 31744
        %275 = vst.msk [vmem:[%s269] sm:$0xff] %vm274, 0.0
        %276 = vst.msk [vmem:[%s269 + $0x8] sm:$0xff] %vm274, 0.0
        %277 = vst.msk [vmem:[%s269 + $0x10] sm:$0xff] %vm274, 0.0
        %278 = vst.msk [vmem:[%s269 + $0x18] sm:$0xff] %vm274, 0.0
        %279 = vst.msk [vmem:[%s269 + $0x20] sm:$0xff] %vm274, 0.0
        %280 = vst.msk [vmem:[%s269 + $0x28] sm:$0xff] %vm274, 0.0
        %281 = vst.msk [vmem:[%s269 + $0x30] sm:$0xff] %vm274, 0.0
        %282 = vst.msk [vmem:[%s269 + $0x38] sm:$0xff] %vm274, 0.0
        %283 = vst.msk [vmem:[%s269 + $0x40] sm:$0xff] %vm274, 0.0
        %284 = vst.msk [vmem:[%s269 + $0x48] sm:$0xff] %vm274, 0.0
        %285 = vst.msk [vmem:[%s269 + $0x50] sm:$0xff] %vm274, 0.0
        %286 = vst.msk [vmem:[%s269 + $0x58] sm:$0xff] %vm274, 0.0
        %287 = vst.msk [vmem:[%s269 + $0x60] sm:$0xff] %vm274, 0.0
        %288 = vst.msk [vmem:[%s269 + $0x68] sm:$0xff] %vm274, 0.0
        %289 = vst.msk [vmem:[%s269 + $0x70] sm:$0xff] %vm274, 0.0
        %290 = vst.msk [vmem:[%s269 + $0x78] sm:$0xff] %vm274, 0.0
        %291 = vst.msk [vmem:[%s269 + $0x80] sm:$0xff] %vm274, 0.0
        %292 = vst.msk [vmem:[%s269 + $0x88] sm:$0xff] %vm274, 0.0
        %vm293 = vcmask 26624
        %294 = vst.msk [vmem:[%s269 + $0x90] sm:$0x7] %vm293, 0.0
      $region36: #{tpu_custom_call.1} parent=31 // pred_fallthru
        _
      %s295 = smul.u32 %s30, 2
      %s296 = sadd.s32 %s295, %s31
      %s297 = sld [smem:[#allocation4 + %s296]]
      %p298 = scmp.gt.s32.totalorder %s297, 0
      // Predicated region
      $region37: #{tpu_custom_call.1} parent=31 // pred_check
        %p299 = pneg %p298
      $region38: #{tpu_custom_call.1} parent=31 // pred_check_branch
        %301 = sbr.rel (%p299) target = $region40
      $region39: #{tpu_custom_call.1} parent=31 // pred_region
        %v302 = vld [vmem:[%s244] sm:$0xff]
        %v303 = vld [vmem:[%s244 + $0x8] sm:$0xff]
        %v304 = vld [vmem:[%s244 + $0x10] sm:$0xff]
        %v305 = vld [vmem:[%s244 + $0x18] sm:$0xff]
        %v306 = vld [vmem:[%s244 + $0x20] sm:$0xff]
        %v307 = vld [vmem:[%s244 + $0x28] sm:$0xff]
        %v308 = vld [vmem:[%s244 + $0x30] sm:$0xff]
        %v309 = vld [vmem:[%s244 + $0x38] sm:$0xff]
        %v310 = vld [vmem:[%s244 + $0x40] sm:$0xff]
        %v311 = vld [vmem:[%s244 + $0x48] sm:$0xff]
        %v312 = vld [vmem:[%s244 + $0x50] sm:$0xff]
        %v313 = vld [vmem:[%s244 + $0x58] sm:$0xff]
        %v314 = vld [vmem:[%s244 + $0x60] sm:$0xff]
        %v315 = vld [vmem:[%s244 + $0x68] sm:$0xff]
        %v316 = vld [vmem:[%s244 + $0x70] sm:$0xff]
        %v317 = vld [vmem:[%s244 + $0x78] sm:$0xff]
        %v318 = vld [vmem:[%s244 + $0x80] sm:$0xff]
        %v319 = vld [vmem:[%s244 + $0x88] sm:$0xff]
        %v320 = vld [vmem:[%s244 + $0x90] sm:$0xff]
        %v321 = vld [vmem:[%s244 + $0x98] sm:$0xff]
        %v322 = vld [vmem:[%s244 + $0xa0] sm:$0xff]
        %v323 = vld [vmem:[%s244 + $0xa8] sm:$0xff]
        %v324 = vld [vmem:[%s244 + $0xb0] sm:$0xff]
        %v325 = vld [vmem:[%s244 + $0xb8] sm:$0xff]
        %v326 = vld [vmem:[%s244 + $0xc0] sm:$0xff]
        %v327 = vld [vmem:[%s244 + $0xc8] sm:$0xff]
        %v328 = vld [vmem:[%s244 + $0xd0] sm:$0xff]
        %v329 = vld [vmem:[%s244 + $0xd8] sm:$0xff]
        %v330 = vld [vmem:[%s244 + $0xe0] sm:$0xff]
        %v331 = vld [vmem:[%s244 + $0xe8] sm:$0xff]
        %v332 = vld [vmem:[%s244 + $0xf0] sm:$0xff]
        %v333 = vld [vmem:[%s244 + $0xf8] sm:$0xff]
        %v334 = vld [vmem:[%s244 + $0x100] sm:$0xff]
        %v335 = vld [vmem:[%s244 + $0x108] sm:$0xff]
        %v336 = vld [vmem:[%s244 + $0x110] sm:$0xff]
        %v337 = vld [vmem:[%s244 + $0x118] sm:$0xff]
        %v338 = vld [vmem:[%s244 + $0x120] sm:$0x7]
        %v339 = vld [vmem:[%s244 + $0x128] sm:$0x7]
        %v340 = vld [vmem:[%s261] sm:$0xff]
        %v341 = vld [vmem:[%s261 + $0x8] sm:$0xff]
        %v342 = vld [vmem:[%s261 + $0x10] sm:$0xff]
        %v343 = vld [vmem:[%s261 + $0x18] sm:$0xff]
        %v344 = vld [vmem:[%s261 + $0x20] sm:$0xff]
        %v345 = vld [vmem:[%s261 + $0x28] sm:$0xff]
        %v346 = vld [vmem:[%s261 + $0x30] sm:$0xff]
        %v347 = vld [vmem:[%s261 + $0x38] sm:$0xff]
        %v348 = vld [vmem:[%s261 + $0x40] sm:$0xff]
        %v349 = vld [vmem:[%s261 + $0x48] sm:$0xff]
        %v350 = vld [vmem:[%s261 + $0x50] sm:$0xff]
        %v351 = vld [vmem:[%s261 + $0x58] sm:$0xff]
        %v352 = vld [vmem:[%s261 + $0x60] sm:$0xff]
        %v353 = vld [vmem:[%s261 + $0x68] sm:$0xff]
        %v354 = vld [vmem:[%s261 + $0x70] sm:$0xff]
        %v355 = vld [vmem:[%s261 + $0x78] sm:$0xff]
        %v356 = vld [vmem:[%s261 + $0x80] sm:$0xff]
        %v357 = vld [vmem:[%s261 + $0x88] sm:$0xff]
        %v358 = vld [vmem:[%s261 + $0x90] sm:$0xff]
        %v359 = vld [vmem:[%s261 + $0x98] sm:$0xff]
        %v360 = vld [vmem:[%s261 + $0xa0] sm:$0xff]
        %v361 = vld [vmem:[%s261 + $0xa8] sm:$0xff]
        %v362 = vld [vmem:[%s261 + $0xb0] sm:$0xff]
        %v363 = vld [vmem:[%s261 + $0xb8] sm:$0xff]
        %v364 = vld [vmem:[%s261 + $0xc0] sm:$0xff]
        %v365 = vld [vmem:[%s261 + $0xc8] sm:$0xff]
        %v366 = vld [vmem:[%s261 + $0xd0] sm:$0xff]
        %v367 = vld [vmem:[%s261 + $0xd8] sm:$0xff]
        %v368 = vld [vmem:[%s261 + $0xe0] sm:$0xff]
        %v369 = vld [vmem:[%s261 + $0xe8] sm:$0xff]
        %v370 = vld [vmem:[%s261 + $0xf0] sm:$0xff]
        %v371 = vld [vmem:[%s261 + $0xf8] sm:$0xff]
        %372 = vmatprep.subr.mxu0 0.0
        %373 = vmatpush1.msra.mxu0 %v340
        %374 = vmatprep.subr.mxu0 0.0
        %375 = vmatpush1.msra.mxu0 %v341
        %376 = vmatprep.subr.mxu0 0.0
        %377 = vmatpush1.msra.mxu0 %v342
        %378 = vmatprep.subr.mxu0 0.0
        %379 = vmatpush1.msra.mxu0 %v343
        %380 = vmatprep.subr.mxu0 0.0
        %381 = vmatpush1.msra.mxu0 %v344
        %382 = vmatprep.subr.mxu0 0.0
        %383 = vmatpush1.msra.mxu0 %v345
        %384 = vmatprep.subr.mxu0 0.0
        %385 = vmatpush1.msra.mxu0 %v346
        %386 = vmatprep.subr.mxu0 0.0
        %387 = vmatpush1.msra.mxu0 %v347
        %388 = vmatprep.subr.mxu0 0.0
        %389 = vmatpush1.msra.mxu0 %v348
        %390 = vmatprep.subr.mxu0 0.0
        %391 = vmatpush1.msra.mxu0 %v349
        %392 = vmatprep.subr.mxu0 0.0
        %393 = vmatpush1.msra.mxu0 %v350
        %394 = vmatprep.subr.mxu0 0.0
        %395 = vmatpush1.msra.mxu0 %v351
        %396 = vmatprep.subr.mxu0 0.0
        %397 = vmatpush1.msra.mxu0 %v352
        %398 = vmatprep.subr.mxu0 0.0
        %399 = vmatpush1.msra.mxu0 %v353
        %400 = vmatprep.subr.mxu0 0.0
        %401 = vmatpush1.msra.mxu0 %v354
        %402 = vmatprep.subr.mxu0 0.0
        %403 = vmatpush1.msra.mxu0 %v355
        %404 = vmatprep.subr.mxu0 0.0
        %405 = vmatpush1.msra.mxu0 %v356
        %406 = vmatprep.subr.mxu0 0.0
        %407 = vmatpush1.msra.mxu0 %v357
        %408 = vmatprep.subr.mxu0 0.0
        %409 = vmatpush1.msra.mxu0 %v358
        %410 = vmatprep.subr.mxu0 0.0
        %411 = vmatpush1.msra.mxu0 %v359
        %412 = vmatprep.subr.mxu0 0.0
        %413 = vmatpush1.msra.mxu0 %v360
        %414 = vmatprep.subr.mxu0 0.0
        %415 = vmatpush1.msra.mxu0 %v361
        %416 = vmatprep.subr.mxu0 0.0
        %417 = vmatpush1.msra.mxu0 %v362
        %418 = vmatprep.subr.mxu0 0.0
        %419 = vmatpush1.msra.mxu0 %v363
        %420 = vmatprep.subr.mxu0 0.0
        %421 = vmatpush1.msra.mxu0 %v364
        %422 = vmatprep.subr.mxu0 0.0
        %423 = vmatpush1.msra.mxu0 %v365
        %424 = vmatprep.subr.mxu0 0.0
        %425 = vmatpush1.msra.mxu0 %v366
        %426 = vmatprep.subr.mxu0 0.0
        %427 = vmatpush1.msra.mxu0 %v367
        %428 = vmatprep.subr.mxu0 0.0
        %429 = vmatpush1.msra.mxu0 %v368
        %430 = vmatprep.subr.mxu0 0.0
        %431 = vmatpush1.msra.mxu0 %v369
        %432 = vmatprep.subr.mxu0 0.0
        %433 = vmatpush1.msra.mxu0 %v370
        %434 = vmatprep.subr.mxu0 0.0
        %435 = vmatpush1.msra.mxu0 %v371
        %436 = vmatprep.mubr.f32.mxu0 %v303
        %437 = vmatmul.mubr.f32.gmra.mrb[0].mxu0 %v302
        %v438 = vpop.f32.mrb[0].mxu0
        %v439 = vadd.f32 0.0, %v438
        %v440 = vpop.f32.mrb[0].mxu0
        %441 = vmatprep.mubr.f32.mxu0 %v305
        %442 = vmatmul.mubr.f32.gmra.mrb[0].mxu0 %v304
        %v443 = vpop.f32.mrb[0].mxu0
        %v444 = vadd.f32 0.0, %v443
        %v445 = vpop.f32.mrb[0].mxu0
        %446 = vmatprep.mubr.f32.mxu0 %v307
        %447 = vmatmul.mubr.f32.gmra.mrb[0].mxu0 %v306
        %v448 = vpop.f32.mrb[0].mxu0
        %v449 = vadd.f32 0.0, %v448
        %v450 = vpop.f32.mrb[0].mxu0
        %451 = vmatprep.mubr.f32.mxu0 %v309
        %452 = vmatmul.mubr.f32.gmra.mrb[0].mxu0 %v308
        %v453 = vpop.f32.mrb[0].mxu0
        %v454 = vadd.f32 0.0, %v453
        %v455 = vpop.f32.mrb[0].mxu0
        %456 = vmatprep.mubr.f32.mxu0 %v311
        %457 = vmatmul.mubr.f32.gmra.mrb[0].mxu0 %v310
        %v458 = vpop.f32.mrb[0].mxu0
        %v459 = vadd.f32 0.0, %v458
        %v460 = vpop.f32.mrb[0].mxu0
        %461 = vmatprep.mubr.f32.mxu0 %v313
        %462 = vmatmul.mubr.f32.gmra.mrb[0].mxu0 %v312
        %v463 = vpop.f32.mrb[0].mxu0
        %v464 = vadd.f32 0.0, %v463
        %v465 = vpop.f32.mrb[0].mxu0
        %466 = vmatprep.mubr.f32.mxu0 %v315
        %467 = vmatmul.mubr.f32.gmra.mrb[0].mxu0 %v314
        %v468 = vpop.f32.mrb[0].mxu0
        %v469 = vadd.f32 0.0, %v468
        %v470 = vpop.f32.mrb[0].mxu0
        %471 = vmatprep.mubr.f32.mxu0 %v317
        %472 = vmatmul.mubr.f32.gmra.mrb[0].mxu0 %v316
        %v473 = vpop.f32.mrb[0].mxu0
        %v474 = vadd.f32 0.0, %v473
        %v475 = vpop.f32.mrb[0].mxu0
        %476 = vmatprep.mubr.f32.mxu0 %v319
        %477 = vmatmul.mubr.f32.gmra.mrb[0].mxu0 %v318
        %v478 = vpop.f32.mrb[0].mxu0
        %v479 = vadd.f32 0.0, %v478
        %v480 = vpop.f32.mrb[0].mxu0
        %481 = vmatprep.mubr.f32.mxu0 %v321
        %482 = vmatmul.mubr.f32.gmra.mrb[0].mxu0 %v320
        %v483 = vpop.f32.mrb[0].mxu0
        %v484 = vadd.f32 0.0, %v483
        %v485 = vpop.f32.mrb[0].mxu0
        %486 = vmatprep.mubr.f32.mxu0 %v323
        %487 = vmatmul.mubr.f32.gmra.mrb[0].mxu0 %v322
        %v488 = vpop.f32.mrb[0].mxu0
        %v489 = vadd.f32 0.0, %v488
        %v490 = vpop.f32.mrb[0].mxu0
        %491 = vmatprep.mubr.f32.mxu0 %v325
        %492 = vmatmul.mubr.f32.gmra.mrb[0].mxu0 %v324
        %v493 = vpop.f32.mrb[0].mxu0
        %v494 = vadd.f32 0.0, %v493
        %v495 = vpop.f32.mrb[0].mxu0
        %496 = vmatprep.mubr.f32.mxu0 %v327
        %497 = vmatmul.mubr.f32.gmra.mrb[0].mxu0 %v326
        %v498 = vpop.f32.mrb[0].mxu0
        %v499 = vadd.f32 0.0, %v498
        %v500 = vpop.f32.mrb[0].mxu0
        %501 = vmatprep.mubr.f32.mxu0 %v329
        %502 = vmatmul.mubr.f32.gmra.mrb[0].mxu0 %v328
        %v503 = vpop.f32.mrb[0].mxu0
        %v504 = vadd.f32 0.0, %v503
        %v505 = vpop.f32.mrb[0].mxu0
        %506 = vmatprep.mubr.f32.mxu0 %v331
        %507 = vmatmul.mubr.f32.gmra.mrb[0].mxu0 %v330
        %v508 = vpop.f32.mrb[0].mxu0
        %v509 = vadd.f32 0.0, %v508
        %v510 = vpop.f32.mrb[0].mxu0
        %511 = vmatprep.mubr.f32.mxu0 %v333
        %512 = vmatmul.mubr.f32.gmra.mrb[0].mxu0 %v332
        %v513 = vpop.f32.mrb[0].mxu0
        %v514 = vadd.f32 0.0, %v513
        %v515 = vpop.f32.mrb[0].mxu0
        %516 = vmatprep.mubr.f32.mxu0 %v335
        %517 = vmatmul.mubr.f32.gmra.mrb[0].mxu0 %v334
        %v518 = vpop.f32.mrb[0].mxu0
        %v519 = vadd.f32 0.0, %v518
        %v520 = vpop.f32.mrb[0].mxu0
        %521 = vmatprep.mubr.f32.mxu0 %v337
        %522 = vmatmul.mubr.f32.gmra.mrb[0].mxu0 %v336
        %v523 = vpop.f32.mrb[0].mxu0
        %v524 = vadd.f32 0.0, %v523
        %v525 = vpop.f32.mrb[0].mxu0
        %526 = vmatprep.mubr.f32.mxu0 %v339
        %527 = vmatmul.mubr.f32.gmra.mrb[0].mxu0 %v338
        %v528 = vpop.f32.mrb[0].mxu0
        %v529 = vadd.f32 0.0, %v528
        %v530 = vpop.f32.mrb[0].mxu0
        %531 = vdwg.mxu0
        %v532 = vld [vmem:[%s269] sm:$0xff]
        %v533 = vld [vmem:[%s269 + $0x8] sm:$0xff]
        %v534 = vld [vmem:[%s269 + $0x10] sm:$0xff]
        %v535 = vld [vmem:[%s269 + $0x18] sm:$0xff]
        %v536 = vld [vmem:[%s269 + $0x20] sm:$0xff]
        %v537 = vld [vmem:[%s269 + $0x28] sm:$0xff]
        %v538 = vld [vmem:[%s269 + $0x30] sm:$0xff]
        %v539 = vld [vmem:[%s269 + $0x38] sm:$0xff]
        %v540 = vld [vmem:[%s269 + $0x40] sm:$0xff]
        %v541 = vld [vmem:[%s269 + $0x48] sm:$0xff]
        %v542 = vld [vmem:[%s269 + $0x50] sm:$0xff]
        %v543 = vld [vmem:[%s269 + $0x58] sm:$0xff]
        %v544 = vld [vmem:[%s269 + $0x60] sm:$0xff]
        %v545 = vld [vmem:[%s269 + $0x68] sm:$0xff]
        %v546 = vld [vmem:[%s269 + $0x70] sm:$0xff]
        %v547 = vld [vmem:[%s269 + $0x78] sm:$0xff]
        %v548 = vld [vmem:[%s269 + $0x80] sm:$0xff]
        %v549 = vld [vmem:[%s269 + $0x88] sm:$0xff]
        %v550 = vld [vmem:[%s269 + $0x90] sm:$0x7]
        %v551 = vld [vmem:[%s253] sm:$0xff]
        %v552 = vld [vmem:[%s253 + $0x8] sm:$0xff]
        %v553 = vld [vmem:[%s253 + $0x10] sm:$0xff]
        %v554 = vld [vmem:[%s253 + $0x18] sm:$0xff]
        %v555 = vld [vmem:[%s253 + $0x20] sm:$0xff]
        %v556 = vld [vmem:[%s253 + $0x28] sm:$0xff]
        %v557 = vld [vmem:[%s253 + $0x30] sm:$0xff]
        %v558 = vld [vmem:[%s253 + $0x38] sm:$0xff]
        %v559 = vld [vmem:[%s253 + $0x40] sm:$0xff]
        %v560 = vld [vmem:[%s253 + $0x48] sm:$0xff]
        %v561 = vld [vmem:[%s253 + $0x50] sm:$0xff]
        %v562 = vld [vmem:[%s253 + $0x58] sm:$0xff]
        %v563 = vld [vmem:[%s253 + $0x60] sm:$0xff]
        %v564 = vld [vmem:[%s253 + $0x68] sm:$0xff]
        %v565 = vld [vmem:[%s253 + $0x70] sm:$0xff]
        %v566 = vld [vmem:[%s253 + $0x78] sm:$0xff]
        %v567 = vld [vmem:[%s253 + $0x80] sm:$0xff]
        %v568 = vld [vmem:[%s253 + $0x88] sm:$0xff]
        %v569 = vld [vmem:[%s253 + $0x90] sm:$0x7]
        %571 = vset.pattern.permute.xlu0 0
        %572 = vperm.xlu0 %571, %v551
        %v573 = vpop.permute.xlu0 %572
        %576 = vset.pattern.permute.xlu0 0
        %577 = vperm.xlu0 %576, %v552
        %v578 = vpop.permute.xlu0 %577
        %581 = vset.pattern.permute.xlu0 0
        %582 = vperm.xlu0 %581, %v553
        %v583 = vpop.permute.xlu0 %582
        %586 = vset.pattern.permute.xlu0 0
        %587 = vperm.xlu0 %586, %v554
        %v588 = vpop.permute.xlu0 %587
        %591 = vset.pattern.permute.xlu0 0
        %592 = vperm.xlu0 %591, %v555
        %v593 = vpop.permute.xlu0 %592
        %596 = vset.pattern.permute.xlu0 0
        %597 = vperm.xlu0 %596, %v556
        %v598 = vpop.permute.xlu0 %597
        %601 = vset.pattern.permute.xlu0 0
        %602 = vperm.xlu0 %601, %v557
        %v603 = vpop.permute.xlu0 %602
        %606 = vset.pattern.permute.xlu0 0
        %607 = vperm.xlu0 %606, %v558
        %v608 = vpop.permute.xlu0 %607
        %611 = vset.pattern.permute.xlu0 0
        %612 = vperm.xlu0 %611, %v559
        %v613 = vpop.permute.xlu0 %612
        %616 = vset.pattern.permute.xlu0 0
        %617 = vperm.xlu0 %616, %v560
        %v618 = vpop.permute.xlu0 %617
        %621 = vset.pattern.permute.xlu0 0
        %622 = vperm.xlu0 %621, %v561
        %v623 = vpop.permute.xlu0 %622
        %626 = vset.pattern.permute.xlu0 0
        %627 = vperm.xlu0 %626, %v562
        %v628 = vpop.permute.xlu0 %627
        %631 = vset.pattern.permute.xlu0 0
        %632 = vperm.xlu0 %631, %v563
        %v633 = vpop.permute.xlu0 %632
        %636 = vset.pattern.permute.xlu0 0
        %637 = vperm.xlu0 %636, %v564
        %v638 = vpop.permute.xlu0 %637
        %641 = vset.pattern.permute.xlu0 0
        %642 = vperm.xlu0 %641, %v565
        %v643 = vpop.permute.xlu0 %642
        %646 = vset.pattern.permute.xlu0 0
        %647 = vperm.xlu0 %646, %v566
        %v648 = vpop.permute.xlu0 %647
        %651 = vset.pattern.permute.xlu0 0
        %652 = vperm.xlu0 %651, %v567
        %v653 = vpop.permute.xlu0 %652
        %656 = vset.pattern.permute.xlu0 0
        %657 = vperm.xlu0 %656, %v568
        %v658 = vpop.permute.xlu0 %657
        %661 = vset.pattern.permute.xlu0 0
        %662 = vperm.xlu0 %661, %v569
        %v663 = vpop.permute.xlu0 %662
        %v665 = vmul.f32 %v439, %v573
        %v666 = vmul.f32 %v444, %v578
        %v667 = vmul.f32 %v449, %v583
        %v668 = vmul.f32 %v454, %v588
        %v669 = vmul.f32 %v459, %v593
        %v670 = vmul.f32 %v464, %v598
        %v671 = vmul.f32 %v469, %v603
        %v672 = vmul.f32 %v474, %v608
        %v673 = vmul.f32 %v479, %v613
        %v674 = vmul.f32 %v484, %v618
        %v675 = vmul.f32 %v489, %v623
        %v676 = vmul.f32 %v494, %v628
        %v677 = vmul.f32 %v499, %v633
        %v678 = vmul.f32 %v504, %v638
        %v679 = vmul.f32 %v509, %v643
        %v680 = vmul.f32 %v514, %v648
        %v681 = vmul.f32 %v519, %v653
        %v682 = vmul.f32 %v524, %v658
        %v683 = vmul.f32 %v529, %v663
        %v684 = vadd.f32 %v532, %v665
        %v685 = vadd.f32 %v533, %v666
        %v686 = vadd.f32 %v534, %v667
        %v687 = vadd.f32 %v535, %v668
        %v688 = vadd.f32 %v536, %v669
        %v689 = vadd.f32 %v537, %v670
        %v690 = vadd.f32 %v538, %v671
        %v691 = vadd.f32 %v539, %v672
        %v692 = vadd.f32 %v540, %v673
        %v693 = vadd.f32 %v541, %v674
        %v694 = vadd.f32 %v542, %v675
        %v695 = vadd.f32 %v543, %v676
        %v696 = vadd.f32 %v544, %v677
        %v697 = vadd.f32 %v545, %v678
        %v698 = vadd.f32 %v546, %v679
        %v699 = vadd.f32 %v547, %v680
        %v700 = vadd.f32 %v548, %v681
        %v701 = vadd.f32 %v549, %v682
        %v702 = vadd.f32 %v550, %v683
        %vm703 = vcmask 31744
        %704 = vst.msk [vmem:[%s269] sm:$0xff] %vm703, %v684
        %705 = vst.msk [vmem:[%s269 + $0x8] sm:$0xff] %vm703, %v685
        %706 = vst.msk [vmem:[%s269 + $0x10] sm:$0xff] %vm703, %v686
        %707 = vst.msk [vmem:[%s269 + $0x18] sm:$0xff] %vm703, %v687
        %708 = vst.msk [vmem:[%s269 + $0x20] sm:$0xff] %vm703, %v688
        %709 = vst.msk [vmem:[%s269 + $0x28] sm:$0xff] %vm703, %v689
        %710 = vst.msk [vmem:[%s269 + $0x30] sm:$0xff] %vm703, %v690
        %711 = vst.msk [vmem:[%s269 + $0x38] sm:$0xff] %vm703, %v691
        %712 = vst.msk [vmem:[%s269 + $0x40] sm:$0xff] %vm703, %v692
        %713 = vst.msk [vmem:[%s269 + $0x48] sm:$0xff] %vm703, %v693
        %714 = vst.msk [vmem:[%s269 + $0x50] sm:$0xff] %vm703, %v694
        %715 = vst.msk [vmem:[%s269 + $0x58] sm:$0xff] %vm703, %v695
        %716 = vst.msk [vmem:[%s269 + $0x60] sm:$0xff] %vm703, %v696
        %717 = vst.msk [vmem:[%s269 + $0x68] sm:$0xff] %vm703, %v697
        %718 = vst.msk [vmem:[%s269 + $0x70] sm:$0xff] %vm703, %v698
        %719 = vst.msk [vmem:[%s269 + $0x78] sm:$0xff] %vm703, %v699
        %720 = vst.msk [vmem:[%s269 + $0x80] sm:$0xff] %vm703, %v700
        %721 = vst.msk [vmem:[%s269 + $0x88] sm:$0xff] %vm703, %v701
        %vm722 = vcmask 26624
        %723 = vst.msk [vmem:[%s269 + $0x90] sm:$0x7] %vm722, %v702
      $region40: #{tpu_custom_call.1} parent=31 // pred_fallthru
        _
      %p724 = scmp.lt.s32.totalorder %s30, 0
      %s725 = scalar_select %p724, %s30, 0
      %s726 = smul.addr %s725, 19
      %s727 = smul.addr %s726, 8
      %s728 = scalar_lea.vmem %s5, %s727
      // Predicated region
      $region41: #{tpu_custom_call.1} parent=31 // pred_check
        %p729 = pneg %p142
      $region42: #{tpu_custom_call.1} parent=31 // pred_check_branch
        %731 = sbr.rel (%p729) target = $region44
      $region43: #{tpu_custom_call.1} parent=31 // pred_region
        _
      $region44: #{tpu_custom_call.1} parent=31 // pred_fallthru
        _
      // Predicated region
      $region45: #{tpu_custom_call.1} parent=31 // pred_check
        %p732 = pneg %p142
      $region46: #{tpu_custom_call.1} parent=31 // pred_check_branch
        %734 = sbr.rel (%p732) target = $region48
      $region47: #{tpu_custom_call.1} parent=31 // pred_region
        %p735 = scmp.lt.s32.totalorder %s30, 0
        %s736 = scalar_select %p735, %s30, 0
        %s737 = smul.addr %s736, 19
        %s738 = smul.addr %s737, 8
        %s739 = scalar_lea.vmem %s5, %s738
      $region48: #{tpu_custom_call.1} parent=31 // pred_fallthru
        _
    $region32: #{tpu_custom_call.1} parent=5 // pred_fallthru
      _
    %p740 = scmp.le.s32.totalorder 2, %s21
    // Predicated region
    $region49: #{tpu_custom_call.1} parent=5 // pred_check
      %p741 = pneg %p740
    $region50: #{tpu_custom_call.1} parent=5 // pred_check_branch
      %743 = sbr.rel (%p741) target = $region52
    $region51: #{tpu_custom_call.1} parent=5 // pred_region
      %s744 = ssub.s32 %s21, 2
    $region52: #{tpu_custom_call.1} parent=5 // pred_fallthru
      _
  $region6: #{tpu_custom_call.1} parent=0 // loop_footer
    %s25 = sadd.s32 1, %s21
  $region7: #{tpu_custom_call.1} parent=0 // loop_footer_branch
    %20 = sbr.rel target = $region3
  $region8: #{tpu_custom_call.1} parent=0 // loop_exit
    _

</llo_original>
